<compile_context>
chip_gen: v7x
topology: tpu7x:2x2x1
jax: 0.10.0
libtpu: 0.0.40
codegen_flags: <defaults>
</compile_context>

<pallas_src>
import functools

import jax
import jax.numpy as jnp
from jax.experimental import pallas as pl
from jax.experimental.pallas import tpu as pltpu


# ---------------------------------------------------------------------------
# Kernel
# ---------------------------------------------------------------------------
def _gcn_kernel(*refs, batch, cout, activation, has_mask, matmul_dtype):
    # refs (has_mask=True):  adj, mask, x_flat, w_bd, bias, out, acc
    # refs (has_mask=False): adj,       x_flat, w_bd, bias, out, acc
    if has_mask:
        adj_ref, mask_ref, x_ref, w_ref, b_ref, out_ref, acc_ref = refs
    else:
        adj_ref, x_ref, w_ref, b_ref, out_ref, acc_ref = refs

    k = pl.program_id(1)

    @pl.when(k == 0)
    def _init():
        acc_ref[...] = jnp.zeros_like(acc_ref)

    a = adj_ref[...]
    if has_mask:
        # Fused mask multiply: free VPU work hidden behind the MXU.
        # TODO(synk): if adj/mask are reused across STSGCN layers, fold
        # adj*mask once outside and drop this stream (halves HBM traffic).
        a = a * mask_ref[...]

    # Vertex aggregation for ALL batches at once (rows, K) @ (K, B*Cin),
    # f32-accumulated across the K grid axis.
    acc_ref[...] += jnp.dot(a.astype(matmul_dtype),
                            x_ref[...].astype(matmul_dtype),
                            preferred_element_type=jnp.float32)

    @pl.when(k == pl.num_programs(1) - 1)
    def _epilogue():
        agg = acc_ref[...].astype(matmul_dtype)            # (rows, B*Cin)
        # Single fused FC against the block-diagonal, column-permuted weight.
        h = jnp.dot(agg, w_ref[...],
                    preferred_element_type=jnp.float32) + b_ref[...]
        if activation == "GLU":
            half = batch * cout                            # lane-aligned split
            out = h[:, :half] * jax.nn.sigmoid(h[:, half:])
        else:
            out = jnp.maximum(h, 0.0)
        out_ref[...] = out.astype(out_ref.dtype)           # one lane-dense store


# ---------------------------------------------------------------------------
# Wrapper helpers
# ---------------------------------------------------------------------------
def _vmem_capacity_bytes():
    try:
        info = pltpu.get_tpu_info()
        cap = getattr(info, "vmem_capacity_bytes", None)
        if cap:
            return int(cap)
    except Exception:
        pass
    return 64 * 2**20          # conservative default = v7x per-core VMEM


def _choose_tiles(n2, batch, cin, cout, wcols, mat_bytes, out_bytes,
                  n_adj_streams):
    """Pick (row_tile, k_tile, vmem_estimate) against the device VMEM budget."""
    budget = int(0.55 * _vmem_capacity_bytes())

    def est(rt, kt):
        adj = 2 * n_adj_streams * rt * kt * mat_bytes      # dbl-buffered adj(+mask)
        x_t = 2 * kt * batch * cin * mat_bytes              # dbl-buffered x rows
        w_r = batch * cin * batch * wcols * mat_bytes        # resident fused weight
        b_r = batch * wcols * 4
        o_t = 2 * rt * batch * cout * out_bytes              # dbl-buffered out
        acc = rt * batch * cin * 4                           # f32 accumulator
        return adj + x_t + w_r + b_r + o_t + acc

    # K tiles must divide 2N exactly (OOB reads on the contraction axis would
    # corrupt the accumulator).  Prefer no K split at all.
    k_cands = [n2] + [k for k in (4096, 2048, 1024, 512, 256, 128)
                      if k < n2 and n2 % k == 0]
    # Row tiles only need 8-alignment (a partial last block is masked on the
    # store).  Excluding rt == n2 guarantees a >=2-step "parallel" grid so both
    # v7x TensorCores get work; a single full block only when 2N <= 8.
    row_cands = [rt for rt in (512, 256, 128, 64, 32, 16, 8) if rt < n2] or [n2]

    for kt in k_cands:                       # fewest K steps first
        for rt in row_cands:                 # largest row tile first
            if est(rt, kt) <= budget:
                return rt, kt, est(rt, kt)
    rt, kt = row_cands[-1], k_cands[-1]
    return rt, kt, est(rt, kt)


def _build_fused_weight(weight_t, bias, batch, cout, activation):
    """Block-diagonal weight (B*Cin, B*wcols) + permuted/tiled bias.

    GLU column layout: [all value cols, batch-major | all gate cols, batch-major]
    so the kernel splits h at B*Cout on a 128-lane boundary and the value half
    is already in the (rows, B*Cout) order the output store / reshape expects.
    """
    eye = jnp.eye(batch, dtype=weight_t.dtype)
    if activation == "GLU":
        w_val, w_gate = weight_t[:, :cout], weight_t[:, cout:]
        b_val, b_gate = bias[:cout], bias[cout:]
        w_bd = jnp.concatenate([jnp.kron(eye, w_val), jnp.kron(eye, w_gate)],
                               axis=1)                       # (B*Cin, 2*B*Cout)
        b_bd = jnp.concatenate([jnp.tile(b_val, batch), jnp.tile(b_gate, batch)])
    else:
        w_bd = jnp.kron(eye, weight_t)                       # (B*Cin, B*Cout)
        b_bd = jnp.tile(bias, batch)
    return w_bd, b_bd


# ---------------------------------------------------------------------------
# Wrapper (only free reshapes -- no transposes, no extra HBM passes)
# ---------------------------------------------------------------------------
def gcn_operation_forward(adj, x, weight_t, bias, out_dim, activation="GLU",
                          mask=None, matmul_dtype=jnp.bfloat16):
    """
    adj      : (2N, 2N)  float32
    x        : (2N, B, Cin) float32   (same axis convention as PyTorch module)
    weight_t : (Cin, 2*Cout) for GLU, (Cin, Cout) for relu  (= W.T of nn.Linear)
    bias     : (2*Cout,) or (Cout,)
    returns  : (2N, B, Cout)
    """
    assert activation in ("GLU", "relu")
    n2, batch, cin = x.shape
    cout = out_dim
    wcols = 2 * cout if activation == "GLU" else cout
    assert weight_t.shape == (cin, wcols), weight_t.shape
    assert bias.shape == (wcols,), bias.shape

    mat_bytes = jnp.dtype(matmul_dtype).itemsize
    out_bytes = jnp.dtype(x.dtype).itemsize
    n_adj_streams = 2 if mask is not None else 1

    # Fused block-diagonal weight + bias (column-permuted for the GLU split).
    w_bd, b_bd = _build_fused_weight(weight_t, bias, batch, cout, activation)

    # Cast the HBM streams once in the wrapper: with bf16 this halves the
    # dominant adj(+mask) DMA bytes as well as taking the fast MXU path.
    adj_m = adj.astype(matmul_dtype)
    mask_m = mask.astype(matmul_dtype) if mask is not None else None
    x_flat = x.reshape(n2, batch * cin).astype(matmul_dtype)     # free reshape
    w_bd = w_bd.astype(matmul_dtype)
    b_bd = b_bd.reshape(1, batch * wcols).astype(jnp.float32)

    row_tile, k_tile, vmem_est = _choose_tiles(
        n2, batch, cin, cout, wcols, mat_bytes, out_bytes, n_adj_streams)
    grid = (pl.cdiv(n2, row_tile), n2 // k_tile)

    adj_spec = pl.BlockSpec((row_tile, k_tile), lambda i, k: (i, k))
    x_spec = pl.BlockSpec((k_tile, batch * cin), lambda i, k: (k, 0))
    w_spec = pl.BlockSpec((batch * cin, batch * wcols), lambda i, k: (0, 0))
    b_spec = pl.BlockSpec((1, batch * wcols), lambda i, k: (0, 0))
    out_spec = pl.BlockSpec((row_tile, batch * cout), lambda i, k: (i, 0))

    if mask is not None:
        inputs = (adj_m, mask_m, x_flat, w_bd, b_bd)
        in_specs = [adj_spec, adj_spec, x_spec, w_spec, b_spec]
    else:
        inputs = (adj_m, x_flat, w_bd, b_bd)
        in_specs = [adj_spec, x_spec, w_spec, b_spec]

    kernel = functools.partial(
        _gcn_kernel, batch=batch, cout=cout, activation=activation,
        has_mask=mask is not None, matmul_dtype=matmul_dtype)

    # Explicit scoped-VMEM limit sized to the actual tile budget (v5e/v6e
    # defaults are 16/32 MiB; v7x physical VMEM is only 64 MiB per core).
    vmem_limit = int(min(0.9 * _vmem_capacity_bytes(),
                         max(2 * vmem_est, 32 * 2**20)))

    out_flat = pl.pallas_call(
        kernel,
        out_shape=jax.ShapeDtypeStruct((n2, batch * cout), x.dtype),
        grid=grid,
        in_specs=in_specs,
        out_specs=out_spec,
        scratch_shapes=[pltpu.VMEM((row_tile, batch * cin), jnp.float32)],
        compiler_params=pltpu.CompilerParams(
            dimension_semantics=("parallel", "arbitrary"),
            vmem_limit_bytes=vmem_limit),
    )(*inputs)

    return out_flat.reshape(n2, batch, cout)     # free reshape back


# ---------------------------------------------------------------------------
# Pure-JAX reference (mirrors the PyTorch forward exactly)
# ---------------------------------------------------------------------------
def gcn_operation_ref(adj, x, weight_t, bias, out_dim, activation="GLU",
                      mask=None):
    if mask is not None:
        adj = adj * mask
    agg = jnp.einsum("nm,mbc->nbc", adj, x)
    h = agg @ weight_t + bias
    if activation == "GLU":
        lhs, rhs = h[..., :out_dim], h[..., out_dim:]
        return lhs * jax.nn.sigmoid(rhs)
    return jnp.maximum(h, 0.0)


# ---------------------------------------------------------------------------
if __name__ == "__main__":
    num_vertices = 8           # N
    n2 = 2 * num_vertices      # 2N = 16 (module's vertex axis is 2*N)
    batch = 4                  # B
    in_dim = 32                # Cin
    out_dim = 32               # Cout

    key = jax.random.PRNGKey(0)
    k_adj, k_x, k_w, k_b, k_m = jax.random.split(key, 5)

    adj = jax.random.uniform(k_adj, (n2, n2), jnp.float32)
    x = jax.random.normal(k_x, (n2, batch, in_dim), jnp.float32)
    mask = (jax.random.uniform(k_m, (n2, n2), jnp.float32) > 0.3).astype(
        jnp.float32)

    for activation in ("GLU", "relu"):
        wcols = 2 * out_dim if activation == "GLU" else out_dim
        bound = 1.0 / jnp.sqrt(jnp.float32(in_dim))
        weight_t = jax.random.uniform(k_w, (in_dim, wcols), jnp.float32,
                                      -bound, bound)     # = W.T of nn.Linear
        bias_v = jax.random.uniform(k_b, (wcols,), jnp.float32, -bound, bound)
        m = mask if activation == "GLU" else None

        ref = gcn_operation_ref(adj, x, weight_t, bias_v, out_dim,
                                activation=activation, mask=m)
        ref_scale = float(jnp.max(jnp.abs(ref)))

        # f32 MXU path: bitwise-tight check.  bf16 path (default on v6e/v7x):
        # f32 accumulation but bf16 matmul inputs -> looser tolerance.
        for mdt, tol in ((jnp.float32, 1e-4),
                         (jnp.bfloat16, 0.08 * ref_scale + 0.1)):
            out = gcn_operation_forward(adj, x, weight_t, bias_v, out_dim,
                                        activation=activation, mask=m,
                                        matmul_dtype=mdt)
            out = jax.block_until_ready(out)
            assert out.shape == (n2, batch, out_dim), out.shape
            err = float(jnp.max(jnp.abs(out - ref)))
            assert err < tol, (activation, str(mdt), err, tol)

    print("KERNEL_OK")
</pallas_src>

<mosaic_0001>
module attributes {stable_mosaic.version = 11 : i64} {
  func.func @_gcn_kernel(%arg0: i32, %arg1: i32, %arg2: memref<8x16xf32, #tpu.memory_space<vmem>>, %arg3: memref<8x16xf32, #tpu.memory_space<vmem>>, %arg4: memref<16x128xf32, #tpu.memory_space<vmem>>, %arg5: memref<128x256xf32, #tpu.memory_space<vmem>>, %arg6: memref<1x256xf32, #tpu.memory_space<vmem>>, %arg7: memref<8x128xf32, #tpu.memory_space<vmem>>, %arg8: memref<8x128xf32, #tpu.memory_space<vmem>>) attributes {dimension_semantics = [#tpu.dimension_semantics<parallel>, #tpu.dimension_semantics<arbitrary>], iteration_bounds = array<i64: 2, 1>, scalar_prefetch = 0 : i64, scratch_operands = 1 : i64, tpu.core_type = #tpu.core_type<tc>, window_params = [{transform_indices = @transform_0, window_bounds = array<i64: 8, 16>}, {transform_indices = @transform_1, window_bounds = array<i64: 8, 16>}, {transform_indices = @transform_2, window_bounds = array<i64: 16, 128>}, {pipeline_mode = #tpu.pipeline_mode<synchronous>, transform_indices = @transform_3, window_bounds = array<i64: 128, 256>}, {pipeline_mode = #tpu.pipeline_mode<synchronous>, transform_indices = @transform_4, window_bounds = array<i64: 1, 256>}, {transform_indices = @transform_5, window_bounds = array<i64: 8, 128>}]} {
    %c0_i32 = arith.constant 0 : i32
    %0 = arith.cmpi eq, %arg1, %c0_i32 : i32
    %1 = arith.extui %0 : i1 to i32
    %c0_i32_0 = arith.constant 0 : i32
    %2 = arith.cmpi ne, %1, %c0_i32_0 : i32
    scf.if %2 {
      %cst_12 = arith.constant 0.000000e+00 : f32
      %14 = vector.broadcast %cst_12 : f32 to vector<8x128xf32>
      %c0_13 = arith.constant 0 : index
      %c0_14 = arith.constant 0 : index
      %15 = vector.load %arg8[%c0_13, %c0_14] : memref<8x128xf32, #tpu.memory_space<vmem>>, vector<8x128xf32>
      tpu.vector_store %arg8[%c0_13, %c0_14], %14 {strides = array<i32>} : memref<8x128xf32, #tpu.memory_space<vmem>>, vector<8x128xf32>,
    } else {
    }
    %c0 = arith.constant 0 : index
    %c0_1 = arith.constant 0 : index
    %3 = vector.load %arg2[%c0, %c0_1] : memref<8x16xf32, #tpu.memory_space<vmem>>, vector<8x16xf32>
    %c0_2 = arith.constant 0 : index
    %c0_3 = arith.constant 0 : index
    %4 = vector.load %arg3[%c0_2, %c0_3] : memref<8x16xf32, #tpu.memory_space<vmem>>, vector<8x16xf32>
    %5 = arith.mulf %3, %4 : vector<8x16xf32>
    %c0_4 = arith.constant 0 : index
    %c0_5 = arith.constant 0 : index
    %6 = vector.load %arg8[%c0_4, %c0_5] : memref<8x128xf32, #tpu.memory_space<vmem>>, vector<8x128xf32>
    %c0_6 = arith.constant 0 : index
    %c0_7 = arith.constant 0 : index
    %7 = vector.load %arg4[%c0_6, %c0_7] : memref<16x128xf32, #tpu.memory_space<vmem>>, vector<16x128xf32>
    %cst = arith.constant dense<0.000000e+00> : vector<8x128xf32>
    %8 = tpu.matmul %5, %7, %cst {dimension_numbers = #tpu.dot_dimension_numbers<[1], [0], [0], [1], [0, 0, 1, 1], [], []>} : vector<8x16xf32>, vector<16x128xf32>, vector<8x128xf32> -> vector<8x128xf32>
    %9 = arith.addf %6, %8 : vector<8x128xf32>
    %c0_8 = arith.constant 0 : index
    %c0_9 = arith.constant 0 : index
    %10 = vector.load %arg8[%c0_8, %c0_9] : memref<8x128xf32, #tpu.memory_space<vmem>>, vector<8x128xf32>
    tpu.vector_store %arg8[%c0_8, %c0_9], %9 {strides = array<i32>} : memref<8x128xf32, #tpu.memory_space<vmem>>, vector<8x128xf32>,
    %c0_i32_10 = arith.constant 0 : i32
    %11 = arith.cmpi eq, %arg1, %c0_i32_10 : i32
    %12 = arith.extui %11 : i1 to i32
    %c0_i32_11 = arith.constant 0 : i32
    %13 = arith.cmpi ne, %12, %c0_i32_11 : i32
    scf.if %13 {
      %c0_12 = arith.constant 0 : index
      %c0_13 = arith.constant 0 : index
      %14 = vector.load %arg8[%c0_12, %c0_13] : memref<8x128xf32, #tpu.memory_space<vmem>>, vector<8x128xf32>
      %c0_14 = arith.constant 0 : index
      %c0_15 = arith.constant 0 : index
      %15 = vector.load %arg5[%c0_14, %c0_15] : memref<128x256xf32, #tpu.memory_space<vmem>>, vector<128x256xf32>
      %cst_16 = arith.constant dense<0.000000e+00> : vector<8x256xf32>
      %16 = tpu.matmul %14, %15, %cst_16 {dimension_numbers = #tpu.dot_dimension_numbers<[1], [0], [0], [1], [0, 0, 1, 1], [], []>} : vector<8x128xf32>, vector<128x256xf32>, vector<8x256xf32> -> vector<8x256xf32>
      %c0_17 = arith.constant 0 : index
      %c0_18 = arith.constant 0 : index
      %17 = vector.load %arg6[%c0_17, %c0_18] : memref<1x256xf32, #tpu.memory_space<vmem>>, vector<1x256xf32>
      %18 = vector.broadcast %17 : vector<1x256xf32> to vector<8x256xf32>
      %19 = arith.addf %16, %18 : vector<8x256xf32>
      %20 = vector.extract_strided_slice %19 {offsets = [0, 0], sizes = [8, 128], strides = [1, 1]} : vector<8x256xf32> to vector<8x128xf32>
      %21 = vector.extract_strided_slice %19 {offsets = [0, 128], sizes = [8, 128], strides = [1, 1]} : vector<8x256xf32> to vector<8x128xf32>
      %22 = arith.negf %21 : vector<8x128xf32>
      %23 = math.exp %22 : vector<8x128xf32>
      %cst_19 = arith.constant 1.000000e+00 : f32
      %24 = vector.broadcast %cst_19 : f32 to vector<8x128xf32>
      %25 = arith.addf %24, %23 : vector<8x128xf32>
      %26 = arith.divf %24, %25 : vector<8x128xf32>
      %27 = arith.mulf %20, %26 : vector<8x128xf32>
      %c0_20 = arith.constant 0 : index
      %c0_21 = arith.constant 0 : index
      %28 = vector.load %arg7[%c0_20, %c0_21] : memref<8x128xf32, #tpu.memory_space<vmem>>, vector<8x128xf32>
      tpu.vector_store %arg7[%c0_20, %c0_21], %27 {strides = array<i32>} : memref<8x128xf32, #tpu.memory_space<vmem>>, vector<8x128xf32>,
    } else {
    }
    return
  }
  func.func @transform_0(%arg0: i32, %arg1: i32) -> (i32, i32) {
    %c0_i32 = arith.constant 0 : i32
    return %arg0, %arg1 : i32, i32
  }
  func.func @transform_1(%arg0: i32, %arg1: i32) -> (i32, i32) {
    %c0_i32 = arith.constant 0 : i32
    return %arg0, %arg1 : i32, i32
  }
  func.func @transform_2(%arg0: i32, %arg1: i32) -> (i32, i32) {
    %c0_i32 = arith.constant 0 : i32
    %c0_i32_0 = arith.constant 0 : i32
    return %arg1, %c0_i32 : i32, i32
  }
  func.func @transform_3(%arg0: i32, %arg1: i32) -> (i32, i32) {
    %c0_i32 = arith.constant 0 : i32
    %c0_i32_0 = arith.constant 0 : i32
    %c0_i32_1 = arith.constant 0 : i32
    return %c0_i32, %c0_i32_0 : i32, i32
  }
  func.func @transform_4(%arg0: i32, %arg1: i32) -> (i32, i32) {
    %c0_i32 = arith.constant 0 : i32
    %c0_i32_0 = arith.constant 0 : i32
    %c0_i32_1 = arith.constant 0 : i32
    return %c0_i32, %c0_i32_0 : i32, i32
  }
  func.func @transform_5(%arg0: i32, %arg1: i32) -> (i32, i32) {
    %c0_i32 = arith.constant 0 : i32
    %c0_i32_0 = arith.constant 0 : i32
    return %arg0, %c0_i32 : i32, i32
  }
}

</mosaic_0001>

<llo_original>
// kernel: tpu_custom_call.1
$region0: #{tpu_custom_call.1}
  #allocation0 [shape = 'u32[]', space=smem, size = 0x4, offset = 0x4, fixed_abs, tag = 'smem constant byte address 0x4 - core index']
  #allocation1 [shape = 'u32[144,128]{1,0:T(1,128)}', space=vmem, size = 0x12000, scoped, tag = 'internal scratch']
  #allocation2 [shape = 'f32[8,128]{1,0:T(8,128)}', space=vmem, size = 0x1000, scoped, tag = 'scratch operand']
  %s0 = inlined_call_operand.hbm [shape: f32[16,16], index: 0, kind: input, shape index: {}]
  %s1 = inlined_call_operand.hbm [shape: f32[16,16], index: 1, kind: input, shape index: {}]
  %s2 = inlined_call_operand.hbm [shape: f32[16,128], index: 2, kind: input, shape index: {}]
  %s3 = inlined_call_operand.hbm [shape: f32[128,256], index: 3, kind: input, shape index: {}]
  %s4 = inlined_call_operand.vmem [shape: f32[1,256], index: 4, kind: input, shape index: {}]
  %s5 = inlined_call_operand.hbm [shape: f32[16,128], index: 5, kind: output, shape index: {}]
  %s6 = sld [smem:[#allocation0]]
  $region77: #{tpu_custom_call.1} parent=0
    _
  %s8 = ssub.s32 1, %s6
  %s9 = scalar_select 0, %s8, %s6
  $region1: #{tpu_custom_call.1} parent=0
    #allocation3 [shape = 'u8[8192]{0}', space=vmem, size = 0x2000, scoped, tag = 'input window, operand 0']
    #allocation4 [shape = 's32[2]{0}', space=sflag, size = 0x8, scoped, tag = 'scoped memory for tpu_custom_call.1']
    #allocation5 [shape = 's32[2]{0}', space=sflag, size = 0x8, scoped, tag = 'scoped memory for tpu_custom_call.1']
    #allocation6 [shape = 'u8[8192]{0}', space=vmem, size = 0x2000, scoped, tag = 'input window, operand 1']
    #allocation7 [shape = 's32[2]{0}', space=sflag, size = 0x8, scoped, tag = 'scoped memory for tpu_custom_call.1']
    #allocation8 [shape = 'u8[8192]{0}', space=vmem, size = 0x2000, scoped, tag = 'input window, operand 2, single buffered']
    #allocation9 [shape = 'u8[131072]{0}', space=vmem, size = 0x20000, scoped, tag = 'input window, operand 3, single buffered']
    #allocation10 [shape = 's32[1]{0}', space=sflag, size = 0x4, scoped, tag = 'scoped memory for tpu_custom_call.1']
    #allocation11 [shape = 'u8[8192]{0}', space=vmem, size = 0x2000, scoped, tag = 'output window, operand 0']
    %10 = vsyncpa [#allocation4], 0
    %s11 = scalar_lea.sflag [#allocation4], 1
    %12 = vsyncpa %s11, 0
    %13 = vsyncpa [#allocation7], 0
    %s14 = scalar_lea.sflag [#allocation7], 1
    %15 = vsyncpa %s14, 0
    %16 = vsyncpa [#allocation10], 0
    %17 = vsyncpa [#allocation5], 0
    %s18 = scalar_lea.sflag [#allocation5], 1
    %19 = vsyncpa %s18, 0
    loop: start=0, step=1, limit=4
    $region2: #{tpu_custom_call.1} parent=1 // loop_pre_header
      _
    $region3: #{tpu_custom_call.1} parent=1 // loop_header
      %s21 = sphi 0, %s25
      %p22 = scmp.ge.s32.totalorder %s21, 4
      %s28 = sphi 0, %s40
      %s29 = sphi 0, %s36
      %s30 = sphi 0, %s28
      %s31 = sphi 0, %s29
      %s32 = sphi 0, %s30
      %s33 = sphi 0, %s31
      %s45 = sphi 0, %s47
      %s48 = sphi 0, %s45
      %s49 = sphi 0, %s48
      %s65 = sphi 0, %s49
      %s73 = sphi 0, %s75
      %s76 = sphi 0, %s73
      %s77 = sphi 0, %s76
      %s93 = sphi 0, %s77
      %s99 = sphi 0, %s101
      %s102 = sphi 0, %s99
      %s103 = sphi 0, %s102
      %s119 = sphi 0, %s103
      %s123 = sphi 0, %s123
      %s125 = sphi 0, %s123
      %s126 = sphi 0, %s125
      %s140 = sphi 0, %s126
      %s144 = sphi 0, %s144
      %s146 = sphi 0, %s144
      %s147 = sphi 0, %s146
      %s161 = sphi 0, %s147
      %s167 = sphi 0, %s169
      %s170 = sphi 0, %s167
      %s171 = sphi 0, %s170
      %s187 = sphi 0, %s171
    $region4: #{tpu_custom_call.1} parent=1 // loop_header_branch
      %24 = sbr.rel (%p22) target = $region8
    $region5: #{tpu_custom_call.1} parent=1 // loop_body
      %s26 = ssub.s32 %s21, 1
      %s27 = ssub.s32 %s21, 2
      %s34 = sadd.s32 1, %s29
      %p35 = scmp.ge.s32.totalorder %s34, 1
      %s36 = scalar_select %p35, 0, %s34
      %s37 = sadd.s32 1, %s28
      %s38 = scalar_select %p35, %s37, %s28
      %p39 = scmp.ge.s32.totalorder %s38, 2
      %s40 = scalar_select %p39, 0, %s38
      %s41 = ssub.s32 %s28, %s40
      %s42 = ssub.s32 %s29, %s36
      %s43 = sor.u32 %s41, %s42
      %p44 = scmp.eq.s32.totalorder %s43, 0
      %s46 = sadd.s32 %s45, 1
      %s47 = scalar_select %p44, %s45, %s46
      %p50 = pneg %p44
      %p51 = scmp.eq.s32.totalorder %s21, 1
      %p52 = por %p50, %p51
      %p53 = scmp.ne.s32.totalorder %s45, %s48
      %p54 = scmp.eq.s32.totalorder %s21, 0
      %p55 = por %p53, %p54
      %p56 = scmp.ne.s32.totalorder %s45, %s48
      %p57 = scmp.eq.s32.totalorder %s26, 1
      %p58 = por %p56, %p57
      %p59 = scmp.ne.s32.totalorder %s48, %s49
      %p60 = scmp.eq.s32.totalorder %s26, 0
      %p61 = por %p59, %p60
      %p62 = scmp.ne.s32.totalorder %s48, %s49
      %p63 = scmp.eq.s32.totalorder %s27, 1
      %p64 = por %p62, %p63
      %p66 = scmp.ne.s32.totalorder %s49, %s65
      %p67 = scmp.eq.s32.totalorder %s27, 0
      %p68 = por %p66, %p67
      %s69 = ssub.s32 %s28, %s40
      %s70 = ssub.s32 %s29, %s36
      %s71 = sor.u32 %s69, %s70
      %p72 = scmp.eq.s32.totalorder %s71, 0
      %s74 = sadd.s32 %s73, 1
      %s75 = scalar_select %p72, %s73, %s74
      %p78 = pneg %p72
      %p79 = scmp.eq.s32.totalorder %s21, 1
      %p80 = por %p78, %p79
      %p81 = scmp.ne.s32.totalorder %s73, %s76
      %p82 = scmp.eq.s32.totalorder %s21, 0
      %p83 = por %p81, %p82
      %p84 = scmp.ne.s32.totalorder %s73, %s76
      %p85 = scmp.eq.s32.totalorder %s26, 1
      %p86 = por %p84, %p85
      %p87 = scmp.ne.s32.totalorder %s76, %s77
      %p88 = scmp.eq.s32.totalorder %s26, 0
      %p89 = por %p87, %p88
      %p90 = scmp.ne.s32.totalorder %s76, %s77
      %p91 = scmp.eq.s32.totalorder %s27, 1
      %p92 = por %p90, %p91
      %p94 = scmp.ne.s32.totalorder %s77, %s93
      %p95 = scmp.eq.s32.totalorder %s27, 0
      %p96 = por %p94, %p95
      %s97 = ssub.s32 %s29, %s36
      %p98 = scmp.eq.s32.totalorder %s97, 0
      %s100 = sadd.s32 %s99, 1
      %s101 = scalar_select %p98, %s99, %s100
      %p104 = pneg %p98
      %p105 = scmp.eq.s32.totalorder %s21, 1
      %p106 = por %p104, %p105
      %p107 = scmp.ne.s32.totalorder %s99, %s102
      %p108 = scmp.eq.s32.totalorder %s21, 0
      %p109 = por %p107, %p108
      %p110 = scmp.ne.s32.totalorder %s99, %s102
      %p111 = scmp.eq.s32.totalorder %s26, 1
      %p112 = por %p110, %p111
      %p113 = scmp.ne.s32.totalorder %s102, %s103
      %p114 = scmp.eq.s32.totalorder %s26, 0
      %p115 = por %p113, %p114
      %p116 = scmp.ne.s32.totalorder %s102, %s103
      %p117 = scmp.eq.s32.totalorder %s27, 1
      %p118 = por %p116, %p117
      %p120 = scmp.ne.s32.totalorder %s103, %s119
      %p121 = scmp.eq.s32.totalorder %s27, 0
      %p122 = por %p120, %p121
      %s124 = sadd.s32 %s123, 1
      %p127 = scmp.eq.s32.totalorder %s21, 1
      %p128 = scmp.ne.s32.totalorder %s123, %s125
      %p129 = scmp.eq.s32.totalorder %s21, 0
      %p130 = por %p128, %p129
      %p131 = scmp.ne.s32.totalorder %s123, %s125
      %p132 = scmp.eq.s32.totalorder %s26, 1
      %p133 = por %p131, %p132
      %p134 = scmp.ne.s32.totalorder %s125, %s126
      %p135 = scmp.eq.s32.totalorder %s26, 0
      %p136 = por %p134, %p135
      %p137 = scmp.ne.s32.totalorder %s125, %s126
      %p138 = scmp.eq.s32.totalorder %s27, 1
      %p139 = por %p137, %p138
      %p141 = scmp.ne.s32.totalorder %s126, %s140
      %p142 = scmp.eq.s32.totalorder %s27, 0
      %p143 = por %p141, %p142
      %s145 = sadd.s32 %s144, 1
      %p148 = scmp.eq.s32.totalorder %s21, 1
      %p149 = scmp.ne.s32.totalorder %s144, %s146
      %p150 = scmp.eq.s32.totalorder %s21, 0
      %p151 = por %p149, %p150
      %p152 = scmp.ne.s32.totalorder %s144, %s146
      %p153 = scmp.eq.s32.totalorder %s26, 1
      %p154 = por %p152, %p153
      %p155 = scmp.ne.s32.totalorder %s146, %s147
      %p156 = scmp.eq.s32.totalorder %s26, 0
      %p157 = por %p155, %p156
      %p158 = scmp.ne.s32.totalorder %s146, %s147
      %p159 = scmp.eq.s32.totalorder %s27, 1
      %p160 = por %p158, %p159
      %p162 = scmp.ne.s32.totalorder %s147, %s161
      %p163 = scmp.eq.s32.totalorder %s27, 0
      %p164 = por %p162, %p163
      %s165 = ssub.s32 %s28, %s40
      %p166 = scmp.eq.s32.totalorder %s165, 0
      %s168 = sadd.s32 %s167, 1
      %s169 = scalar_select %p166, %s167, %s168
      %p172 = pneg %p166
      %p173 = scmp.eq.s32.totalorder %s21, 1
      %p174 = por %p172, %p173
      %p175 = scmp.ne.s32.totalorder %s167, %s170
      %p176 = scmp.eq.s32.totalorder %s21, 0
      %p177 = por %p175, %p176
      %p178 = scmp.ne.s32.totalorder %s167, %s170
      %p179 = scmp.eq.s32.totalorder %s26, 1
      %p180 = por %p178, %p179
      %p181 = scmp.ne.s32.totalorder %s170, %s171
      %p182 = scmp.eq.s32.totalorder %s26, 0
      %p183 = por %p181, %p182
      %p184 = scmp.ne.s32.totalorder %s170, %s171
      %p185 = scmp.eq.s32.totalorder %s27, 1
      %p186 = por %p184, %p185
      %p188 = scmp.ne.s32.totalorder %s171, %s187
      %p189 = scmp.eq.s32.totalorder %s27, 0
      %p190 = por %p188, %p189
      %p191 = scmp.le.s32.totalorder 1, %s21
      %p192 = scmp.lt.s32.totalorder %s21, 3
      %p193 = pnand %p191, %p192
      %p194 = pneg %p193
      // Predicated region
      $region9: #{tpu_custom_call.1} parent=5 // pred_check
        _
      $region10: #{tpu_custom_call.1} parent=5 // pred_check_branch
        %196 = sbr.rel (%p193) target = $region12
      $region11: #{tpu_custom_call.1} parent=5 // pred_region
        %s197 = ssub.s32 %s21, 1
        // Predicated region
        $region13: #{tpu_custom_call.1} parent=11 // pred_check
          %p198 = pneg %p115
        $region14: #{tpu_custom_call.1} parent=11 // pred_check_branch
          %200 = sbr.rel (%p198) target = $region16
        $region15: #{tpu_custom_call.1} parent=11 // pred_region
          %s201 = smul.u32 2, %s31
          %s203 = ssub.s32 256, 256
          %204 = vsyncadd [#allocation7], %s203
          %s205 = smul.addr %s201, 128
          %s206 = scalar_lea.hbm %s2, %s205
          %s207 = sshll.u32 [#allocation8], 4
          %s208 = int_to_ptr.vmem [resolvable:$true] %s207
          %213 = dma.hbm_to_vmem [thread:$0]  %s206, 256, %s208, [#allocation7], 128, 128, 8
        $region16: #{tpu_custom_call.1} parent=11 // pred_fallthru
          _
        // Predicated region
        $region17: #{tpu_custom_call.1} parent=11 // pred_check
          %p214 = pneg %p136
        $region18: #{tpu_custom_call.1} parent=11 // pred_check_branch
          %216 = sbr.rel (%p214) target = $region20
        $region19: #{tpu_custom_call.1} parent=11 // pred_region
          %s218 = ssub.s32 4096, 4096
          %219 = vsyncadd [#allocation10], %s218
          %s220 = sshll.u32 [#allocation9], 4
          %s221 = int_to_ptr.vmem [resolvable:$true] %s220
          %226 = dma.hbm_to_vmem [thread:$0]  %s3, 4096, %s221, [#allocation10], 256, 256, 16
        $region20: #{tpu_custom_call.1} parent=11 // pred_fallthru
          _
        // Predicated region
        $region21: #{tpu_custom_call.1} parent=11 // pred_check
          %p227 = pneg %p157
        $region22: #{tpu_custom_call.1} parent=11 // pred_check_branch
          %229 = sbr.rel (%p227) target = $region24
        $region23: #{tpu_custom_call.1} parent=11 // pred_region
          _
        $region24: #{tpu_custom_call.1} parent=11 // pred_fallthru
          _
      $region12: #{tpu_custom_call.1} parent=5 // pred_fallthru
        _
      %p230 = scmp.lt.s32.totalorder %s21, 2
      // Predicated region
      $region25: #{tpu_custom_call.1} parent=5 // pred_check
        %p231 = pneg %p230
      $region26: #{tpu_custom_call.1} parent=5 // pred_check_branch
        %233 = sbr.rel (%p231) target = $region28
      $region27: #{tpu_custom_call.1} parent=5 // pred_region
        // Predicated region
        $region29: #{tpu_custom_call.1} parent=27 // pred_check
          %p234 = pneg %p55
        $region30: #{tpu_custom_call.1} parent=27 // pred_check_branch
          %236 = sbr.rel (%p234) target = $region32
        $region31: #{tpu_custom_call.1} parent=27 // pred_region
          %s237 = sand.u32 %s45, 1
          %s238 = scalar_lea.sflag [#allocation4], %s237
          %s239 = sand.u32 %s45, 1
          %s240 = smul.addr %s239, 8
          %s241 = scalar_lea.vmem [#allocation3], %s240
          %s243 = ssub.s32 128, 128
          %244 = vsyncadd %s238, %s243
          %s245 = sadd.s32 %s29, %s28
          %s246 = smul.addr %s245, 128
          %s247 = scalar_lea.hbm %s0, %s246
          %s249 = sshll.u32 %s241, 4
          %s250 = int_to_ptr.vmem [resolvable:$true] %s249
          %252 = dma.hbm_to_vmem [thread:$0]  %s247, 128, %s250, %s238
        $region32: #{tpu_custom_call.1} parent=27 // pred_fallthru
          _
        // Predicated region
        $region33: #{tpu_custom_call.1} parent=27 // pred_check
          %p253 = pneg %p83
        $region34: #{tpu_custom_call.1} parent=27 // pred_check_branch
          %255 = sbr.rel (%p253) target = $region36
        $region35: #{tpu_custom_call.1} parent=27 // pred_region
          %s256 = sand.u32 %s21, 1
          %s257 = scalar_lea.sflag [#allocation7], %s256
          %s258 = sand.u32 %s73, 1
          %s259 = smul.addr %s258, 8
          %s260 = scalar_lea.vmem [#allocation6], %s259
          %s262 = ssub.s32 128, 128
          %263 = vsyncadd %s257, %s262
          %s264 = sadd.s32 %s29, %s28
          %s265 = smul.addr %s264, 128
          %s266 = scalar_lea.hbm %s1, %s265
          %s268 = sshll.u32 %s260, 4
          %s269 = int_to_ptr.vmem [resolvable:$true] %s268
          %271 = dma.hbm_to_vmem [thread:$0]  %s266, 128, %s269, %s257
        $region36: #{tpu_custom_call.1} parent=27 // pred_fallthru
          _
      $region28: #{tpu_custom_call.1} parent=5 // pred_fallthru
        _
      %p272 = scmp.le.s32.totalorder 1, %s21
      %p273 = scmp.lt.s32.totalorder %s21, 3
      %p274 = pnand %p272, %p273
      %p275 = pneg %p274
      // Predicated region
      $region37: #{tpu_custom_call.1} parent=5 // pred_check
        _
      $region38: #{tpu_custom_call.1} parent=5 // pred_check_branch
        %277 = sbr.rel (%p274) target = $region40
      $region39: #{tpu_custom_call.1} parent=5 // pred_region
        %s278 = ssub.s32 %s21, 1
        %s279 = sand.u32 %s48, 1
        %s280 = scalar_lea.sflag [#allocation4], %s279
        %s281 = sand.u32 %s48, 1
        %s282 = smul.addr %s281, 8
        %s283 = scalar_lea.vmem [#allocation3], %s282
        // Predicated region
        $region41: #{tpu_custom_call.1} parent=39 // pred_check
          %p284 = pneg %p61
        $region42: #{tpu_custom_call.1} parent=39 // pred_check_branch
          %286 = sbr.rel (%p284) target = $region44
        $region43: #{tpu_custom_call.1} parent=39 // pred_region
          %287 = dma.done %s280, 128
        $region44: #{tpu_custom_call.1} parent=39 // pred_fallthru
          _
        %s288 = sand.u32 %s26, 1
        %s289 = scalar_lea.sflag [#allocation7], %s288
        %s290 = sand.u32 %s76, 1
        %s291 = smul.addr %s290, 8
        %s292 = scalar_lea.vmem [#allocation6], %s291
        // Predicated region
        $region45: #{tpu_custom_call.1} parent=39 // pred_check
          %p293 = pneg %p89
        $region46: #{tpu_custom_call.1} parent=39 // pred_check_branch
          %295 = sbr.rel (%p293) target = $region48
        $region47: #{tpu_custom_call.1} parent=39 // pred_region
          %296 = dma.done %s289, 128
        $region48: #{tpu_custom_call.1} parent=39 // pred_fallthru
          _
        // Predicated region
        $region49: #{tpu_custom_call.1} parent=39 // pred_check
          %p297 = pneg %p115
        $region50: #{tpu_custom_call.1} parent=39 // pred_check_branch
          %299 = sbr.rel (%p297) target = $region52
        $region51: #{tpu_custom_call.1} parent=39 // pred_region
          %300 = dma.done [#allocation7], 256
        $region52: #{tpu_custom_call.1} parent=39 // pred_fallthru
          _
        // Predicated region
        $region53: #{tpu_custom_call.1} parent=39 // pred_check
          %p301 = pneg %p136
        $region54: #{tpu_custom_call.1} parent=39 // pred_check_branch
          %303 = sbr.rel (%p301) target = $region56
        $region55: #{tpu_custom_call.1} parent=39 // pred_region
          %304 = dma.done [#allocation10], 4096
        $region56: #{tpu_custom_call.1} parent=39 // pred_fallthru
          _
        %s305 = sand.u32 %s48, 1
        %s306 = scalar_lea.sflag [#allocation4], %s305
        %s307 = sand.u32 %s48, 1
        %s308 = smul.addr %s307, 8
        %s309 = scalar_lea.vmem [#allocation3], %s308
        %p310 = pneg %p61
        %p311 = pneg %p58
        %s312 = sand.u32 %s26, 1
        %s313 = scalar_lea.sflag [#allocation7], %s312
        %s314 = sand.u32 %s76, 1
        %s315 = smul.addr %s314, 8
        %s316 = scalar_lea.vmem [#allocation6], %s315
        %p317 = pneg %p89
        %p318 = pneg %p86
        %p319 = pneg %p115
        %p320 = pneg %p112
        %p321 = pneg %p136
        %p322 = pneg %p133
        %p323 = pneg %p157
        %p324 = pneg %p154
        %p325 = pneg %p183
        %p326 = pneg %p180
        %s327 = sand.u32 %s170, 1
        %s328 = scalar_lea.sflag [#allocation5], %s327
        %s329 = sand.u32 %s170, 1
        %s330 = smul.addr %s329, 8
        %s331 = scalar_lea.vmem [#allocation11], %s330
        %s332 = smul.u32 2, %s31
        %p333 = scmp.eq.s32.totalorder %s31, 0
        // Predicated region
        $region57: #{tpu_custom_call.1} parent=39 // pred_check
          %p334 = pneg %p333
        $region58: #{tpu_custom_call.1} parent=39 // pred_check_branch
          %336 = sbr.rel (%p334) target = $region60
        $region59: #{tpu_custom_call.1} parent=39 // pred_region
          %337 = vst [vmem:[#allocation2] sm:$0xff] 0.0
        $region60: #{tpu_custom_call.1} parent=39 // pred_fallthru
          _
        %v338 = vld [vmem:[%s283] sm:$0xff]
        %v339 = vld [vmem:[%s292] sm:$0xff]
        %v340 = vmul.f32 %v338, %v339
        %v341 = vld [vmem:[#allocation2] sm:$0xff]
        %v342 = vld [vmem:[#allocation8] sm:$0xff]
        %v343 = vld [vmem:[#allocation8 + $0x8] sm:$0xff]
        %vm344 = vcmask 130048
        %v346 = vsel %vm344, %v340, 0
        %348 = vmatprep.subr.mxu0 0.0
        %349 = vmatpush1.msra.mxu0 %v342
        %350 = vmatprep.subr.mxu0 0.0
        %351 = vmatpush1.msra.mxu0 %v343
        %352 = vmatprep.subr.mxu0 0.0
        %353 = vmatpush1.msra.mxu0 0.0
        %354 = vmatprep.subr.mxu0 0.0
        %355 = vmatpush1.msra.mxu0 0.0
        %356 = vmatprep.subr.mxu0 0.0
        %357 = vmatpush1.msra.mxu0 0.0
        %358 = vmatprep.subr.mxu0 0.0
        %359 = vmatpush1.msra.mxu0 0.0
        %360 = vmatprep.subr.mxu0 0.0
        %361 = vmatpush1.msra.mxu0 0.0
        %362 = vmatprep.subr.mxu0 0.0
        %363 = vmatpush1.msra.mxu0 0.0
        %364 = vmatprep.subr.mxu0 0.0
        %365 = vmatpush1.msra.mxu0 0.0
        %366 = vmatprep.subr.mxu0 0.0
        %367 = vmatpush1.msra.mxu0 0.0
        %368 = vmatprep.subr.mxu0 0.0
        %369 = vmatpush1.msra.mxu0 0.0
        %370 = vmatprep.subr.mxu0 0.0
        %371 = vmatpush1.msra.mxu0 0.0
        %372 = vmatprep.subr.mxu0 0.0
        %373 = vmatpush1.msra.mxu0 0.0
        %374 = vmatprep.subr.mxu0 0.0
        %375 = vmatpush1.msra.mxu0 0.0
        %376 = vmatprep.subr.mxu0 0.0
        %377 = vmatpush1.msra.mxu0 0.0
        %378 = vmatprep.subr.mxu0 0.0
        %379 = vmatpush1.msra.mxu0 0.0
        %380 = vmatprep.subr.mxu0 0.0
        %381 = vmatpush1.msra.mxu0 0.0
        %382 = vmatprep.subr.mxu0 0.0
        %383 = vmatpush1.msra.mxu0 0.0
        %384 = vmatprep.subr.mxu0 0.0
        %385 = vmatpush1.msra.mxu0 0.0
        %386 = vmatprep.subr.mxu0 0.0
        %387 = vmatpush1.msra.mxu0 0.0
        %388 = vmatprep.subr.mxu0 0.0
        %389 = vmatpush1.msra.mxu0 0.0
        %390 = vmatprep.subr.mxu0 0.0
        %391 = vmatpush1.msra.mxu0 0.0
        %392 = vmatprep.subr.mxu0 0.0
        %393 = vmatpush1.msra.mxu0 0.0
        %394 = vmatprep.subr.mxu0 0.0
        %395 = vmatpush1.msra.mxu0 0.0
        %396 = vmatprep.subr.mxu0 0.0
        %397 = vmatpush1.msra.mxu0 0.0
        %398 = vmatprep.subr.mxu0 0.0
        %399 = vmatpush1.msra.mxu0 0.0
        %400 = vmatprep.subr.mxu0 0.0
        %401 = vmatpush1.msra.mxu0 0.0
        %402 = vmatprep.subr.mxu0 0.0
        %403 = vmatpush1.msra.mxu0 0.0
        %404 = vmatprep.subr.mxu0 0.0
        %405 = vmatpush1.msra.mxu0 0.0
        %406 = vmatprep.subr.mxu0 0.0
        %407 = vmatpush1.msra.mxu0 0.0
        %408 = vmatprep.subr.mxu0 0.0
        %409 = vmatpush1.msra.mxu0 0.0
        %410 = vmatprep.subr.mxu0 0.0
        %411 = vmatpush1.msra.mxu0 0.0
        %412 = vmatprep.mubr.f32.mxu0 0.0
        %413 = vmatmul.mubr.f32.gmra.mrb[0].mxu0 %v346
        %v414 = vpop.f32.mrb[0].mxu0
        %v415 = vadd.f32 0.0, %v414
        %v416 = vpop.f32.mrb[0].mxu0
        %417 = vdwg.mxu0
        %v418 = vadd.f32 %v341, %v415
        %419 = vst [vmem:[#allocation2] sm:$0xff] %v418
        // Predicated region
        $region61: #{tpu_custom_call.1} parent=39 // pred_check
          %p420 = pneg %p333
        $region62: #{tpu_custom_call.1} parent=39 // pred_check_branch
          %422 = sbr.rel (%p420) target = $region64
        $region63: #{tpu_custom_call.1} parent=39 // pred_region
          %v423 = vld [vmem:[#allocation2] sm:$0xff]
          %v424 = vld [vmem:[#allocation9] sm:$0xff]
          %v425 = vld [vmem:[#allocation9 + $0x8] sm:$0xff]
          %v426 = vld [vmem:[#allocation9 + $0x10] sm:$0xff]
          %v427 = vld [vmem:[#allocation9 + $0x18] sm:$0xff]
          %v428 = vld [vmem:[#allocation9 + $0x20] sm:$0xff]
          %v429 = vld [vmem:[#allocation9 + $0x28] sm:$0xff]
          %v430 = vld [vmem:[#allocation9 + $0x30] sm:$0xff]
          %v431 = vld [vmem:[#allocation9 + $0x38] sm:$0xff]
          %v432 = vld [vmem:[#allocation9 + $0x40] sm:$0xff]
          %v433 = vld [vmem:[#allocation9 + $0x48] sm:$0xff]
          %v434 = vld [vmem:[#allocation9 + $0x50] sm:$0xff]
          %v435 = vld [vmem:[#allocation9 + $0x58] sm:$0xff]
          %v436 = vld [vmem:[#allocation9 + $0x60] sm:$0xff]
          %v437 = vld [vmem:[#allocation9 + $0x68] sm:$0xff]
          %v438 = vld [vmem:[#allocation9 + $0x70] sm:$0xff]
          %v439 = vld [vmem:[#allocation9 + $0x78] sm:$0xff]
          %v440 = vld [vmem:[#allocation9 + $0x80] sm:$0xff]
          %v441 = vld [vmem:[#allocation9 + $0x88] sm:$0xff]
          %v442 = vld [vmem:[#allocation9 + $0x90] sm:$0xff]
          %v443 = vld [vmem:[#allocation9 + $0x98] sm:$0xff]
          %v444 = vld [vmem:[#allocation9 + $0xa0] sm:$0xff]
          %v445 = vld [vmem:[#allocation9 + $0xa8] sm:$0xff]
          %v446 = vld [vmem:[#allocation9 + $0xb0] sm:$0xff]
          %v447 = vld [vmem:[#allocation9 + $0xb8] sm:$0xff]
          %v448 = vld [vmem:[#allocation9 + $0xc0] sm:$0xff]
          %v449 = vld [vmem:[#allocation9 + $0xc8] sm:$0xff]
          %v450 = vld [vmem:[#allocation9 + $0xd0] sm:$0xff]
          %v451 = vld [vmem:[#allocation9 + $0xd8] sm:$0xff]
          %v452 = vld [vmem:[#allocation9 + $0xe0] sm:$0xff]
          %v453 = vld [vmem:[#allocation9 + $0xe8] sm:$0xff]
          %v454 = vld [vmem:[#allocation9 + $0xf0] sm:$0xff]
          %v455 = vld [vmem:[#allocation9 + $0xf8] sm:$0xff]
          %v456 = vld [vmem:[%s4] sm:$0x3]
          %v458 = vlaneseq
          %v459 = vshrl.u32 %v458, 7
          %v460 = vsub.s32 0, %v459
          %v461 = vrot.slane %v456, %v460
          %v462 = vlaneseq
          %v463 = vshrl.u32 %v462, 7
          %v464 = vsub.s32 1, %v463
          %v465 = vrot.slane %v456, %v464
          %468 = vmatprep.subr.mxu0 %v425
          %469 = vmatpush1.msra.mxu0 %v424
          %470 = vmatprep.subr.mxu0 %v427
          %471 = vmatpush1.msra.mxu0 %v426
          %472 = vmatprep.subr.mxu0 %v429
          %473 = vmatpush1.msra.mxu0 %v428
          %474 = vmatprep.subr.mxu0 %v431
          %475 = vmatpush1.msra.mxu0 %v430
          %476 = vmatprep.subr.mxu0 %v433
          %477 = vmatpush1.msra.mxu0 %v432
          %478 = vmatprep.subr.mxu0 %v435
          %479 = vmatpush1.msra.mxu0 %v434
          %480 = vmatprep.subr.mxu0 %v437
          %481 = vmatpush1.msra.mxu0 %v436
          %482 = vmatprep.subr.mxu0 %v439
          %483 = vmatpush1.msra.mxu0 %v438
          %484 = vmatprep.subr.mxu0 %v441
          %485 = vmatpush1.msra.mxu0 %v440
          %486 = vmatprep.subr.mxu0 %v443
          %487 = vmatpush1.msra.mxu0 %v442
          %488 = vmatprep.subr.mxu0 %v445
          %489 = vmatpush1.msra.mxu0 %v444
          %490 = vmatprep.subr.mxu0 %v447
          %491 = vmatpush1.msra.mxu0 %v446
          %492 = vmatprep.subr.mxu0 %v449
          %493 = vmatpush1.msra.mxu0 %v448
          %494 = vmatprep.subr.mxu0 %v451
          %495 = vmatpush1.msra.mxu0 %v450
          %496 = vmatprep.subr.mxu0 %v453
          %497 = vmatpush1.msra.mxu0 %v452
          %498 = vmatprep.subr.mxu0 %v455
          %499 = vmatpush1.msra.mxu0 %v454
          %500 = vmatprep.subr.mxu0 0.0
          %501 = vmatpush1.msra.mxu0 0.0
          %502 = vmatprep.subr.mxu0 0.0
          %503 = vmatpush1.msra.mxu0 0.0
          %504 = vmatprep.subr.mxu0 0.0
          %505 = vmatpush1.msra.mxu0 0.0
          %506 = vmatprep.subr.mxu0 0.0
          %507 = vmatpush1.msra.mxu0 0.0
          %508 = vmatprep.subr.mxu0 0.0
          %509 = vmatpush1.msra.mxu0 0.0
          %510 = vmatprep.subr.mxu0 0.0
          %511 = vmatpush1.msra.mxu0 0.0
          %512 = vmatprep.subr.mxu0 0.0
          %513 = vmatpush1.msra.mxu0 0.0
          %514 = vmatprep.subr.mxu0 0.0
          %515 = vmatpush1.msra.mxu0 0.0
          %516 = vmatprep.subr.mxu0 0.0
          %517 = vmatpush1.msra.mxu0 0.0
          %518 = vmatprep.subr.mxu0 0.0
          %519 = vmatpush1.msra.mxu0 0.0
          %520 = vmatprep.subr.mxu0 0.0
          %521 = vmatpush1.msra.mxu0 0.0
          %522 = vmatprep.subr.mxu0 0.0
          %523 = vmatpush1.msra.mxu0 0.0
          %524 = vmatprep.subr.mxu0 0.0
          %525 = vmatpush1.msra.mxu0 0.0
          %526 = vmatprep.subr.mxu0 0.0
          %527 = vmatpush1.msra.mxu0 0.0
          %528 = vmatprep.subr.mxu0 0.0
          %529 = vmatpush1.msra.mxu0 0.0
          %530 = vmatprep.subr.mxu0 0.0
          %531 = vmatpush1.msra.mxu0 0.0
          %532 = vmatprep.mubr.f32.mxu0 0.0
          %533 = vmatmul.mubr.f32.gmra.mrb[0].mxu0 %v423
          %v534 = vpop.f32.mrb[0].mxu0
          %v535 = vadd.f32 %v461, %v534
          %v536 = vpop.f32.mrb[0].mxu0
          %v537 = vadd.f32 %v465, %v536
          %538 = vdwg.mxu0
          %v539 = vxor.u32 %v537, 2147483648
          %v540 = vmul.f32 %v539, 1.442695
          %v541 = vpow.pop %v540
          %v542 = vadd.f32 %v541, 1.0
          %v543 = vrcp.pop %v542
          %v544 = vmul.f32 1.0, %v543
          %v545 = vmul.f32 %v535, %v544
          %546 = vst [vmem:[%s331] sm:$0xff] %v545
        $region64: #{tpu_custom_call.1} parent=39 // pred_fallthru
          _
        %s547 = sand.u32 %s170, 1
        %s548 = scalar_lea.sflag [#allocation5], %s547
        %s549 = sand.u32 %s170, 1
        %s550 = smul.addr %s549, 8
        %s551 = scalar_lea.vmem [#allocation11], %s550
        // Predicated region
        $region65: #{tpu_custom_call.1} parent=39 // pred_check
          %p552 = pneg %p180
        $region66: #{tpu_custom_call.1} parent=39 // pred_check_branch
          %554 = sbr.rel (%p552) target = $region68
        $region67: #{tpu_custom_call.1} parent=39 // pred_region
          %s556 = ssub.s32 128, 128
          %557 = vsyncadd %s548, %s556
          %s558 = smul.addr %s30, 128
          %s559 = scalar_lea.hbm %s5, %s558
          %s561 = sshll.u32 %s551, 4
          %s562 = int_to_ptr.vmem [resolvable:$true] %s561
          %564 = dma.vmem_to_hbm [thread:$0]  %s562, 128, %s559, %s548
        $region68: #{tpu_custom_call.1} parent=39 // pred_fallthru
          _
      $region40: #{tpu_custom_call.1} parent=5 // pred_fallthru
        _
      %p565 = scmp.le.s32.totalorder 2, %s21
      // Predicated region
      $region69: #{tpu_custom_call.1} parent=5 // pred_check
        %p566 = pneg %p565
      $region70: #{tpu_custom_call.1} parent=5 // pred_check_branch
        %568 = sbr.rel (%p566) target = $region72
      $region71: #{tpu_custom_call.1} parent=5 // pred_region
        %s569 = ssub.s32 %s21, 2
        // Predicated region
        $region73: #{tpu_custom_call.1} parent=71 // pred_check
          %p570 = pneg %p186
        $region74: #{tpu_custom_call.1} parent=71 // pred_check_branch
          %572 = sbr.rel (%p570) target = $region76
        $region75: #{tpu_custom_call.1} parent=71 // pred_region
          %s573 = sand.u32 %s171, 1
          %s574 = scalar_lea.sflag [#allocation5], %s573
          %s575 = sand.u32 %s171, 1
          %s576 = smul.addr %s575, 8
          %s577 = scalar_lea.vmem [#allocation11], %s576
          %578 = dma.done %s574, 128
        $region76: #{tpu_custom_call.1} parent=71 // pred_fallthru
          _
      $region72: #{tpu_custom_call.1} parent=5 // pred_fallthru
        _
    $region6: #{tpu_custom_call.1} parent=1 // loop_footer
      %s25 = sadd.s32 1, %s21
    $region7: #{tpu_custom_call.1} parent=1 // loop_footer_branch
      %20 = sbr.rel target = $region3
    $region8: #{tpu_custom_call.1} parent=1 // loop_exit
      _
    %579 = vsyncpa [#allocation4], 1
    %s580 = scalar_lea.sflag [#allocation4], 1
    %581 = vsyncpa %s580, 1
    %582 = vsyncpa [#allocation7], 1
    %s583 = scalar_lea.sflag [#allocation7], 1
    %584 = vsyncpa %s583, 1
    %585 = vsyncpa [#allocation10], 1
    %586 = vsyncpa [#allocation5], 1
    %s587 = scalar_lea.sflag [#allocation5], 1
    %588 = vsyncpa %s587, 1

</llo_original>
